<compile_context>
chip_gen: v7x
topology: tpu7x:2x2x1
jax: 0.10.0
libtpu: 0.0.40
codegen_flags: <defaults>
</compile_context>

<pallas_src>
import jax
import jax.numpy as jnp
from jax.experimental import pallas as pl
from jax.experimental.pallas import tpu as pltpu

IN1, OUT1 = 10, 20   # fc1
IN2, OUT2 = 20, 10   # fc2
LANE = 128           # TPU lane width


def _round_up(n, m):
    return ((n + m - 1) // m) * m


def fused_mlp_kernel(wT_ref, b_ref, xT_ref, oT_ref):
    # wT_ref: (OUT2, IN1)  fused weight, transposed (resident)
    # b_ref : (OUT2, 1)    fused bias (resident)
    # xT_ref: (IN1, TB)    batch tile, batch on the lane axis (streamed)
    # oT_ref: (OUT2, TB)   output tile (streamed, lane-dense unmasked stores)
    y = jnp.dot(wT_ref[...], xT_ref[...], preferred_element_type=jnp.float32)
    oT_ref[...] = (y + b_ref[...]).astype(oT_ref.dtype)


def simple_model_forward(x, w1, b1, w2, b2, *, tb_max=1024):
    """x: (B, 10) f32; w1: (10, 20); b1: (20,); w2: (20, 10); b2: (10,).

    Weights are stored pre-transposed to (in, out) (i.e. W.T in PyTorch terms),
    so the reference forward is (x @ w1 + b1) @ w2 + b2.
    """
    B = x.shape[0]

    # --- exact algebraic fusion of the two bias-only linear layers ---
    w_f = w1 @ w2                      # (IN1, OUT2) = (10, 10)
    b_f = b1 @ w2 + b2                 # (OUT2,)
    wT = w_f.T                         # (OUT2, IN1): left operand of kernel matmul
    b_col = b_f.reshape(OUT2, 1)

    # --- lane-dense batch tiling: batch maps to the 128-wide lane axis ---
    tb = min(tb_max, _round_up(B, LANE))     # tile size, multiple of 128
    b_pad = _round_up(B, tb)                 # pad so the grid divides evenly
    xT = jnp.zeros((IN1, b_pad), x.dtype).at[:, :B].set(x.T)

    grid = (b_pad // tb,)
    flops = 2 * IN1 * OUT2 * b_pad + OUT2 * b_pad
    bytes_accessed = 4 * (IN1 * b_pad + OUT2 * b_pad + IN1 * OUT2 + OUT2)

    out_T = pl.pallas_call(
        fused_mlp_kernel,
        out_shape=jax.ShapeDtypeStruct((OUT2, b_pad), jnp.float32),
        grid=grid,
        in_specs=[
            pl.BlockSpec((OUT2, IN1), lambda i: (0, 0)),   # fused weight: resident
            pl.BlockSpec((OUT2, 1), lambda i: (0, 0)),     # fused bias: resident
            pl.BlockSpec((IN1, tb), lambda i: (0, i)),     # streamed batch tile
        ],
        out_specs=pl.BlockSpec((OUT2, tb), lambda i: (0, i)),
        compiler_params=pltpu.CompilerParams(
            dimension_semantics=("parallel",)),            # shard batch tiles across TCs
        cost_estimate=pl.CostEstimate(
            flops=flops, transcendentals=0, bytes_accessed=bytes_accessed),
    )(wT, b_col, xT)

    # Un-pad and return in the original (B, out_features) layout.
    return out_T[:, :B].T


def init_params(key):
    """PyTorch nn.Linear default init (U[-1/sqrt(fan_in), 1/sqrt(fan_in)]).
    Weights are stored already transposed to (in, out)."""
    k1, k2, k3, k4 = jax.random.split(key, 4)
    bound1 = 1.0 / jnp.sqrt(IN1)
    bound2 = 1.0 / jnp.sqrt(IN2)
    w1 = jax.random.uniform(k1, (IN1, OUT1), jnp.float32, -bound1, bound1)
    b1 = jax.random.uniform(k2, (OUT1,), jnp.float32, -bound1, bound1)
    w2 = jax.random.uniform(k3, (IN2, OUT2), jnp.float32, -bound2, bound2)
    b2 = jax.random.uniform(k4, (OUT2,), jnp.float32, -bound2, bound2)
    return w1, b1, w2, b2


if __name__ == "__main__":
    key = jax.random.PRNGKey(0)
    k_in, k_params = jax.random.split(key)
    w1, b1, w2, b2 = init_params(k_params)

    # Small demo batch, matching the original module's tiny feature sizes.
    B = 8
    x = jax.random.normal(k_in, (B, IN1), jnp.float32)
    out = jax.block_until_ready(simple_model_forward(x, w1, b1, w2, b2))
    ref = (x @ w1 + b1) @ w2 + b2
    assert out.shape == (B, OUT2)
    assert jnp.allclose(out, ref, atol=1e-5, rtol=1e-5)

    # Exercise the multi-tile batch grid + padding path (3 tiles of 128).
    B2 = 300
    x2 = jax.random.normal(jax.random.PRNGKey(1), (B2, IN1), jnp.float32)
    out2 = jax.block_until_ready(
        simple_model_forward(x2, w1, b1, w2, b2, tb_max=128))
    ref2 = (x2 @ w1 + b1) @ w2 + b2
    assert out2.shape == (B2, OUT2)
    assert jnp.allclose(out2, ref2, atol=1e-5, rtol=1e-5)

    print("KERNEL_OK")
</pallas_src>

<mosaic_0001>
module attributes {stable_mosaic.version = 11 : i64} {
  func.func @fused_mlp_kernel(%arg0: i32, %arg1: memref<10x10xf32, #tpu.memory_space<vmem>>, %arg2: memref<10x1xf32, #tpu.memory_space<vmem>>, %arg3: memref<10x128xf32, #tpu.memory_space<vmem>>, %arg4: memref<10x128xf32, #tpu.memory_space<vmem>>) attributes {dimension_semantics = [#tpu.dimension_semantics<parallel>], iteration_bounds = array<i64: 1>, scalar_prefetch = 0 : i64, scratch_operands = 0 : i64, tpu.core_type = #tpu.core_type<tc>, window_params = [{pipeline_mode = #tpu.pipeline_mode<synchronous>, transform_indices = @transform_0, window_bounds = array<i64: 10, 10>}, {pipeline_mode = #tpu.pipeline_mode<synchronous>, transform_indices = @transform_1, window_bounds = array<i64: 10, 1>}, {transform_indices = @transform_2, window_bounds = array<i64: 10, 128>}, {transform_indices = @transform_3, window_bounds = array<i64: 10, 128>}]} {
    %c0 = arith.constant 0 : index
    %c0_0 = arith.constant 0 : index
    %0 = vector.load %arg1[%c0, %c0_0] : memref<10x10xf32, #tpu.memory_space<vmem>>, vector<10x10xf32>
    %c0_1 = arith.constant 0 : index
    %c0_2 = arith.constant 0 : index
    %1 = vector.load %arg3[%c0_1, %c0_2] : memref<10x128xf32, #tpu.memory_space<vmem>>, vector<10x128xf32>
    %cst = arith.constant dense<0.000000e+00> : vector<10x128xf32>
    %2 = tpu.matmul %0, %1, %cst {dimension_numbers = #tpu.dot_dimension_numbers<[1], [0], [0], [1], [0, 0, 1, 1], [], []>} : vector<10x10xf32>, vector<10x128xf32>, vector<10x128xf32> -> vector<10x128xf32>
    %c0_3 = arith.constant 0 : index
    %c0_4 = arith.constant 0 : index
    %3 = vector.load %arg2[%c0_3, %c0_4] : memref<10x1xf32, #tpu.memory_space<vmem>>, vector<10x1xf32>
    %4 = vector.broadcast %3 : vector<10x1xf32> to vector<10x128xf32>
    %5 = arith.addf %2, %4 : vector<10x128xf32>
    %c0_5 = arith.constant 0 : index
    %c0_6 = arith.constant 0 : index
    %6 = vector.load %arg4[%c0_5, %c0_6] : memref<10x128xf32, #tpu.memory_space<vmem>>, vector<10x128xf32>
    tpu.vector_store %arg4[%c0_5, %c0_6], %5 {strides = array<i32>} : memref<10x128xf32, #tpu.memory_space<vmem>>, vector<10x128xf32>,
    return
  }
  func.func @transform_0(%arg0: i32) -> (i32, i32) {
    %c0_i32 = arith.constant 0 : i32
    %c0_i32_0 = arith.constant 0 : i32
    %c0_i32_1 = arith.constant 0 : i32
    return %c0_i32, %c0_i32_0 : i32, i32
  }
  func.func @transform_1(%arg0: i32) -> (i32, i32) {
    %c0_i32 = arith.constant 0 : i32
    %c0_i32_0 = arith.constant 0 : i32
    %c0_i32_1 = arith.constant 0 : i32
    return %c0_i32, %c0_i32_0 : i32, i32
  }
  func.func @transform_2(%arg0: i32) -> (i32, i32) {
    %c0_i32 = arith.constant 0 : i32
    %c0_i32_0 = arith.constant 0 : i32
    return %c0_i32, %arg0 : i32, i32
  }
  func.func @transform_3(%arg0: i32) -> (i32, i32) {
    %c0_i32 = arith.constant 0 : i32
    %c0_i32_0 = arith.constant 0 : i32
    return %c0_i32, %arg0 : i32, i32
  }
}

</mosaic_0001>

<llo_original>
// kernel: tpu_custom_call.1
$region0: #{tpu_custom_call.1}
  #allocation0 [shape = 'u32[]', space=smem, size = 0x4, offset = 0x4, fixed_abs, tag = 'smem constant byte address 0x4 - core index']
  #allocation1 [shape = 'u32[144,128]{1,0:T(1,128)}', space=vmem, size = 0x12000, scoped, tag = 'internal scratch']
  %s0 = inlined_call_operand.vmem [shape: f32[10,10], index: 0, kind: input, shape index: {}]
  %s1 = inlined_call_operand.vmem [shape: f32[10,1], index: 1, kind: input, shape index: {}]
  %s2 = inlined_call_operand.hbm [shape: f32[10,128], index: 2, kind: input, shape index: {}]
  %s3 = inlined_call_operand.hbm [shape: f32[10,128], index: 3, kind: output, shape index: {}]
  %s4 = sld [smem:[#allocation0]]
  $region26: #{tpu_custom_call.1} parent=0
    _
  %s6 = ssub.s32 1, %s4
  %s7 = scalar_select 0, %s6, %s4
  $region1: #{tpu_custom_call.1} parent=0
    #allocation2 [shape = 'u8[8192]{0}', space=vmem, size = 0x2000, scoped, tag = 'input window, operand 2, single buffered']
    #allocation3 [shape = 's32[1]{0}', space=sflag, size = 0x4, scoped, tag = 'scoped memory for tpu_custom_call.1']
    #allocation4 [shape = 's32[1]{0}', space=sflag, size = 0x4, scoped, tag = 'scoped memory for tpu_custom_call.1']
    #allocation5 [shape = 'u8[8192]{0}', space=vmem, size = 0x2000, scoped, tag = 'output window, operand 0, single buffered']
    %8 = vsyncpa [#allocation3], 0
    %9 = vsyncpa [#allocation4], 0
    // Predicated region
    $region2: #{tpu_custom_call.1} parent=1 // pred_check
      _
    $region3: #{tpu_custom_call.1} parent=1 // pred_check_branch
      %11 = sbr.rel (0) target = $region5
    $region4: #{tpu_custom_call.1} parent=1 // pred_region
      _
    $region5: #{tpu_custom_call.1} parent=1 // pred_fallthru
      _
    // Predicated region
    $region6: #{tpu_custom_call.1} parent=1 // pred_check
      _
    $region7: #{tpu_custom_call.1} parent=1 // pred_check_branch
      %13 = sbr.rel (0) target = $region9
    $region8: #{tpu_custom_call.1} parent=1 // pred_region
      _
    $region9: #{tpu_custom_call.1} parent=1 // pred_fallthru
      _
    // Predicated region
    $region10: #{tpu_custom_call.1} parent=1 // pred_check
      _
    $region11: #{tpu_custom_call.1} parent=1 // pred_check_branch
      %15 = sbr.rel (0) target = $region13
    $region12: #{tpu_custom_call.1} parent=1 // pred_region
      %s17 = ssub.s32 256, 256
      %18 = vsyncadd [#allocation3], %s17
      %s19 = sshll.u32 [#allocation2], 4
      %s20 = int_to_ptr.vmem [resolvable:$true] %s19
      %25 = dma.hbm_to_vmem [thread:$0]  %s2, 256, %s20, [#allocation3], 128, 128, 8
    $region13: #{tpu_custom_call.1} parent=1 // pred_fallthru
      _
    // Predicated region
    $region14: #{tpu_custom_call.1} parent=1 // pred_check
      _
    $region15: #{tpu_custom_call.1} parent=1 // pred_check_branch
      %27 = sbr.rel (0) target = $region17
    $region16: #{tpu_custom_call.1} parent=1 // pred_region
      %28 = dma.done [#allocation3], 256
    $region17: #{tpu_custom_call.1} parent=1 // pred_fallthru
      _
    %v29 = vld [vmem:[%s0] sm:$0xff]
    %v30 = vld [vmem:[%s0 + $0x8] sm:$0x3]
    %v31 = vld [vmem:[#allocation2] sm:$0xff]
    %v32 = vld [vmem:[#allocation2 + $0x8] sm:$0x3]
    %v33 = vld [vmem:[%s1] sm:$0xff]
    %v34 = vld [vmem:[%s1 + $0x8] sm:$0x3]
    %36 = vset.pattern.permute.xlu0 0
    %37 = vperm.xlu0 %36, %v33
    %v38 = vpop.permute.xlu0 %37
    %41 = vset.pattern.permute.xlu0 0
    %42 = vperm.xlu0 %41, %v34
    %v43 = vpop.permute.xlu0 %42
    %vm45 = vcmask 80896
    %v47 = vsel %vm45, %v29, 0
    %v50 = vsel %vm45, %v30, 0
    %vm52 = vcmask 1041408
    %v54 = vsel %vm52, %v32, 0
    %56 = vmatprep.subr.mxu0 0.0
    %57 = vmatpush1.msra.mxu0 %v31
    %58 = vmatprep.subr.mxu0 0.0
    %59 = vmatpush1.msra.mxu0 %v54
    %60 = vmatprep.subr.mxu0 0.0
    %61 = vmatpush1.msra.mxu0 0.0
    %62 = vmatprep.subr.mxu0 0.0
    %63 = vmatpush1.msra.mxu0 0.0
    %64 = vmatprep.subr.mxu0 0.0
    %65 = vmatpush1.msra.mxu0 0.0
    %66 = vmatprep.subr.mxu0 0.0
    %67 = vmatpush1.msra.mxu0 0.0
    %68 = vmatprep.subr.mxu0 0.0
    %69 = vmatpush1.msra.mxu0 0.0
    %70 = vmatprep.subr.mxu0 0.0
    %71 = vmatpush1.msra.mxu0 0.0
    %72 = vmatprep.subr.mxu0 0.0
    %73 = vmatpush1.msra.mxu0 0.0
    %74 = vmatprep.subr.mxu0 0.0
    %75 = vmatpush1.msra.mxu0 0.0
    %76 = vmatprep.subr.mxu0 0.0
    %77 = vmatpush1.msra.mxu0 0.0
    %78 = vmatprep.subr.mxu0 0.0
    %79 = vmatpush1.msra.mxu0 0.0
    %80 = vmatprep.subr.mxu0 0.0
    %81 = vmatpush1.msra.mxu0 0.0
    %82 = vmatprep.subr.mxu0 0.0
    %83 = vmatpush1.msra.mxu0 0.0
    %84 = vmatprep.subr.mxu0 0.0
    %85 = vmatpush1.msra.mxu0 0.0
    %86 = vmatprep.subr.mxu0 0.0
    %87 = vmatpush1.msra.mxu0 0.0
    %88 = vmatprep.subr.mxu0 0.0
    %89 = vmatpush1.msra.mxu0 0.0
    %90 = vmatprep.subr.mxu0 0.0
    %91 = vmatpush1.msra.mxu0 0.0
    %92 = vmatprep.subr.mxu0 0.0
    %93 = vmatpush1.msra.mxu0 0.0
    %94 = vmatprep.subr.mxu0 0.0
    %95 = vmatpush1.msra.mxu0 0.0
    %96 = vmatprep.subr.mxu0 0.0
    %97 = vmatpush1.msra.mxu0 0.0
    %98 = vmatprep.subr.mxu0 0.0
    %99 = vmatpush1.msra.mxu0 0.0
    %100 = vmatprep.subr.mxu0 0.0
    %101 = vmatpush1.msra.mxu0 0.0
    %102 = vmatprep.subr.mxu0 0.0
    %103 = vmatpush1.msra.mxu0 0.0
    %104 = vmatprep.subr.mxu0 0.0
    %105 = vmatpush1.msra.mxu0 0.0
    %106 = vmatprep.subr.mxu0 0.0
    %107 = vmatpush1.msra.mxu0 0.0
    %108 = vmatprep.subr.mxu0 0.0
    %109 = vmatpush1.msra.mxu0 0.0
    %110 = vmatprep.subr.mxu0 0.0
    %111 = vmatpush1.msra.mxu0 0.0
    %112 = vmatprep.subr.mxu0 0.0
    %113 = vmatpush1.msra.mxu0 0.0
    %114 = vmatprep.subr.mxu0 0.0
    %115 = vmatpush1.msra.mxu0 0.0
    %116 = vmatprep.subr.mxu0 0.0
    %117 = vmatpush1.msra.mxu0 0.0
    %118 = vmatprep.subr.mxu0 0.0
    %119 = vmatpush1.msra.mxu0 0.0
    %120 = vmatprep.mubr.f32.mxu0 0.0
    %121 = vmatmul.mubr.f32.gmra.mrb[0].mxu0 %v47
    %v122 = vpop.f32.mrb[0].mxu0
    %v123 = vadd.f32 %v38, %v122
    %v124 = vpop.f32.mrb[0].mxu0
    %125 = vmatprep.mubr.f32.mxu0 0.0
    %126 = vmatmul.mubr.f32.gmra.mrb[0].mxu0 %v50
    %v127 = vpop.f32.mrb[0].mxu0
    %v128 = vadd.f32 %v43, %v127
    %v129 = vpop.f32.mrb[0].mxu0
    %130 = vdwg.mxu0
    %131 = vst [vmem:[#allocation5] sm:$0xff] %v123
    %132 = vst [vmem:[#allocation5 + $0x8] sm:$0x3] %v128
    // Predicated region
    $region18: #{tpu_custom_call.1} parent=1 // pred_check
      _
    $region19: #{tpu_custom_call.1} parent=1 // pred_check_branch
      %134 = sbr.rel (0) target = $region21
    $region20: #{tpu_custom_call.1} parent=1 // pred_region
      %s136 = ssub.s32 256, 256
      %137 = vsyncadd [#allocation4], %s136
      %s138 = sshll.u32 [#allocation5], 4
      %s139 = int_to_ptr.vmem [resolvable:$true] %s138
      %144 = dma.vmem_to_hbm [thread:$0]  %s139, 256, %s3, [#allocation4], 128, 128, 8
    $region21: #{tpu_custom_call.1} parent=1 // pred_fallthru
      _
    // Predicated region
    $region22: #{tpu_custom_call.1} parent=1 // pred_check
      _
    $region23: #{tpu_custom_call.1} parent=1 // pred_check_branch
      %146 = sbr.rel (0) target = $region25
    $region24: #{tpu_custom_call.1} parent=1 // pred_region
      %147 = dma.done [#allocation4], 256
    $region25: #{tpu_custom_call.1} parent=1 // pred_fallthru
      _
    %148 = vsyncpa [#allocation3], 1
    %149 = vsyncpa [#allocation4], 1

</llo_original>
